<compile_context>
chip_gen: v5e
topology: v5e:2x2
jax: 0.10.0
libtpu: 0.0.40
codegen_flags: <defaults>
</compile_context>

<pallas_src>
import math

import jax
import jax.numpy as jnp
from jax.experimental import pallas as pl
from jax.experimental.pallas import tpu as pltpu


def _add_pe_kernel(x_ref, pe_ref, o_ref):
    # x_ref: (TB, N) rows of the flattened input; pe_ref: (1, N) shared table.
    # (1, N) + (TB, N) is a plain sublane-broadcast VPU add; store is lane-dense.
    o_ref[...] = (x_ref[...] + pe_ref[...]).astype(o_ref.dtype)


def make_pe_table(embed_dim: int = 64, max_len: int = 50, scale: int = 100):
    """Builds the (max_len, embed_dim) sinusoidal table, matching PyTorch init."""
    assert embed_dim % 2 == 0, "embed_dim must be even (sin/cos interleave)"
    position = jnp.arange(0, max_len, dtype=jnp.float32)[:, None]            # (max_len, 1)
    div_term = jnp.exp(
        jnp.arange(0, embed_dim, 2, dtype=jnp.float32)
        * (-(math.log(float(scale)) / embed_dim))
    )                                                                         # (embed_dim/2,)
    pe = jnp.zeros((max_len, embed_dim), dtype=jnp.float32)
    pe = pe.at[:, 0::2].set(jnp.sin(position * div_term))
    pe = pe.at[:, 1::2].set(jnp.cos(position * div_term))
    return pe                                                                 # (max_len, embed_dim)


def _pick_batch_block(B: int, row_bytes: int, target_bytes: int = 2 << 20) -> int:
    """Rows per block: ~2 MiB per buffer (fits v5e's 16 MiB scoped VMEM with
    double-buffered x + out), sublane-aligned, or the full batch if small."""
    tb = max(1, target_bytes // max(row_bytes, 1))
    if tb >= B:
        return B                      # single / few big steps; full second-minor dim
    tb = max(8, (tb // 8) * 8)        # (8, 128) constraint: multiple of 8 when < B
    return min(tb, B)


def positional_encoding(x: jax.Array, pe_table: jax.Array) -> jax.Array:
    """x: (B, S, D); pe_table: (max_len, D). Returns x + pe[None, :S, :]."""
    B, S, D = x.shape
    assert S <= pe_table.shape[0] and D == pe_table.shape[1]

    # Glue outside the kernel: static slice, dtype match, lane-dense flatten.
    N = S * D
    pe_flat = pe_table[:S, :].astype(x.dtype).reshape(1, N)   # (1, S*D)
    x_flat = x.reshape(B, N)                                  # (B, S*D) — contiguous flatten

    row_bytes = N * x_flat.dtype.itemsize
    TB = _pick_batch_block(B, row_bytes)
    grid = (pl.cdiv(B, TB),)

    out_flat = pl.pallas_call(
        _add_pe_kernel,
        out_shape=jax.ShapeDtypeStruct((B, N), x.dtype),
        grid=grid,
        in_specs=[
            pl.BlockSpec((TB, N), lambda i: (i, 0)),   # x rows: one block per step
            pl.BlockSpec((1, N), lambda i: (0, 0)),    # pe: same (1, N) block every step
        ],
        out_specs=pl.BlockSpec((TB, N), lambda i: (i, 0)),
        compiler_params=pltpu.CompilerParams(
            dimension_semantics=("parallel",),          # batch blocks are independent (megacore)
        ),
    )(x_flat, pe_flat)

    return out_flat.reshape(B, S, D)


if __name__ == "__main__":
    embed_dim, max_len, scale = 64, 50, 100
    batch, seq = 2, 8

    pe_table = make_pe_table(embed_dim=embed_dim, max_len=max_len, scale=scale)

    key = jax.random.PRNGKey(0)
    x = jax.random.normal(key, (batch, seq, embed_dim), dtype=jnp.float32)

    out = positional_encoding(x, pe_table)
    out = jax.block_until_ready(out)

    # sanity check against pure-JAX reference
    ref = x + pe_table[None, :seq, :]
    assert out.shape == x.shape
    assert jnp.allclose(out, ref, atol=1e-6), "mismatch vs reference"

    print("KERNEL_OK")
</pallas_src>

<mosaic_0001>
module attributes {stable_mosaic.version = 11 : i64} {
  func.func @_add_pe_kernel(%arg0: i32, %arg1: memref<2x512xf32, #tpu.memory_space<vmem>>, %arg2: memref<1x512xf32, #tpu.memory_space<vmem>>, %arg3: memref<2x512xf32, #tpu.memory_space<vmem>>) attributes {dimension_semantics = [#tpu.dimension_semantics<parallel>], iteration_bounds = array<i64: 1>, scalar_prefetch = 0 : i64, scratch_operands = 0 : i64, tpu.core_type = #tpu.core_type<tc>, window_params = [{transform_indices = @transform_0, window_bounds = array<i64: 2, 512>}, {pipeline_mode = #tpu.pipeline_mode<synchronous>, transform_indices = @transform_1, window_bounds = array<i64: 1, 512>}, {transform_indices = @transform_2, window_bounds = array<i64: 2, 512>}]} {
    %c0 = arith.constant 0 : index
    %c0_0 = arith.constant 0 : index
    %0 = vector.load %arg1[%c0, %c0_0] : memref<2x512xf32, #tpu.memory_space<vmem>>, vector<2x512xf32>
    %c0_1 = arith.constant 0 : index
    %c0_2 = arith.constant 0 : index
    %1 = vector.load %arg2[%c0_1, %c0_2] : memref<1x512xf32, #tpu.memory_space<vmem>>, vector<1x512xf32>
    %2 = vector.broadcast %1 : vector<1x512xf32> to vector<2x512xf32>
    %3 = arith.addf %0, %2 : vector<2x512xf32>
    %c0_3 = arith.constant 0 : index
    %c0_4 = arith.constant 0 : index
    %4 = vector.load %arg3[%c0_3, %c0_4] : memref<2x512xf32, #tpu.memory_space<vmem>>, vector<2x512xf32>
    tpu.vector_store %arg3[%c0_3, %c0_4], %3 {strides = array<i32>} : memref<2x512xf32, #tpu.memory_space<vmem>>, vector<2x512xf32>,
    return
  }
  func.func @transform_0(%arg0: i32) -> (i32, i32) {
    %c0_i32 = arith.constant 0 : i32
    %c0_i32_0 = arith.constant 0 : i32
    return %arg0, %c0_i32 : i32, i32
  }
  func.func @transform_1(%arg0: i32) -> (i32, i32) {
    %c0_i32 = arith.constant 0 : i32
    %c0_i32_0 = arith.constant 0 : i32
    %c0_i32_1 = arith.constant 0 : i32
    return %c0_i32, %c0_i32_0 : i32, i32
  }
  func.func @transform_2(%arg0: i32) -> (i32, i32) {
    %c0_i32 = arith.constant 0 : i32
    %c0_i32_0 = arith.constant 0 : i32
    return %arg0, %c0_i32 : i32, i32
  }
}

</mosaic_0001>

<llo_original>
// kernel: tpu_custom_call.1
$region0: #{tpu_custom_call.1}
  #allocation0 [shape = 'u32[]', space=smem, size = 0x4, offset = 0x4, fixed_abs, tag = 'smem constant byte address 0x4 - core index']
  #allocation1 [shape = 'u32[72,128]{1,0:T(1,128)}', space=vmem, size = 0x9000, scoped, tag = 'internal scratch']
  %s0 = inlined_call_operand.hbm [shape: f32[2,512], index: 0, kind: input, shape index: {}]
  %s1 = inlined_call_operand.hbm [shape: f32[1,512], index: 1, kind: input, shape index: {}]
  %s2 = inlined_call_operand.hbm [shape: f32[2,512], index: 2, kind: output, shape index: {}]
  %s3 = sld [smem:[#allocation0]]
  $region26: #{tpu_custom_call.1} parent=0
    _
  %s5 = ssub.s32 1, %s3
  %s6 = scalar_select 0, %s5, %s3
  $region1: #{tpu_custom_call.1} parent=0
    #allocation2 [shape = 'u8[4096]{0}', space=vmem, size = 0x1000, scoped, tag = 'input window, operand 0, single buffered']
    #allocation3 [shape = 's32[1]{0}', space=sflag, size = 0x4, scoped, tag = 'scoped memory for tpu_custom_call.1']
    #allocation4 [shape = 's32[1]{0}', space=sflag, size = 0x4, scoped, tag = 'scoped memory for tpu_custom_call.1']
    #allocation5 [shape = 'u8[2048]{0}', space=vmem, size = 0x800, scoped, tag = 'input window, operand 1, single buffered']
    #allocation6 [shape = 's32[1]{0}', space=sflag, size = 0x4, scoped, tag = 'scoped memory for tpu_custom_call.1']
    #allocation7 [shape = 'u8[4096]{0}', space=vmem, size = 0x1000, scoped, tag = 'output window, operand 0, single buffered']
    %7 = vsyncpa [#allocation3], 0
    %8 = vsyncpa [#allocation6], 0
    %9 = vsyncpa [#allocation4], 0
    // Predicated region
    $region2: #{tpu_custom_call.1} parent=1 // pred_check
      _
    $region3: #{tpu_custom_call.1} parent=1 // pred_check_branch
      %11 = sbr.rel (0) target = $region5
    $region4: #{tpu_custom_call.1} parent=1 // pred_region
      %13 = vsyncadd [#allocation3], 0
      %s15 = sshll.u32 %s0, 4
      %s16 = int_to_ptr.hbm [resolvable:$true] %s15
      %s17 = sshll.u32 [#allocation2], 4
      %s18 = int_to_ptr.vmem [resolvable:$true] %s17
      %20 = dma.hbm_to_vmem [thread:$0]  %s16, 128, %s18, [#allocation3]
    $region5: #{tpu_custom_call.1} parent=1 // pred_fallthru
      _
    // Predicated region
    $region6: #{tpu_custom_call.1} parent=1 // pred_check
      _
    $region7: #{tpu_custom_call.1} parent=1 // pred_check_branch
      %22 = sbr.rel (0) target = $region9
    $region8: #{tpu_custom_call.1} parent=1 // pred_region
      %24 = vsyncadd [#allocation6], 0
      %s26 = sshll.u32 %s1, 4
      %s27 = int_to_ptr.hbm [resolvable:$true] %s26
      %s28 = sshll.u32 [#allocation5], 4
      %s29 = int_to_ptr.vmem [resolvable:$true] %s28
      %31 = dma.hbm_to_vmem [thread:$0]  %s27, 64, %s29, [#allocation6]
    $region9: #{tpu_custom_call.1} parent=1 // pred_fallthru
      _
    // Predicated region
    $region10: #{tpu_custom_call.1} parent=1 // pred_check
      _
    $region11: #{tpu_custom_call.1} parent=1 // pred_check_branch
      %33 = sbr.rel (0) target = $region13
    $region12: #{tpu_custom_call.1} parent=1 // pred_region
      %35 = dma.done [#allocation3], 128
    $region13: #{tpu_custom_call.1} parent=1 // pred_fallthru
      _
    // Predicated region
    $region14: #{tpu_custom_call.1} parent=1 // pred_check
      _
    $region15: #{tpu_custom_call.1} parent=1 // pred_check_branch
      %37 = sbr.rel (0) target = $region17
    $region16: #{tpu_custom_call.1} parent=1 // pred_region
      %39 = dma.done [#allocation6], 64
    $region17: #{tpu_custom_call.1} parent=1 // pred_fallthru
      _
    %v40 = vld [vmem:[#allocation2] sm:$0xff]
    %v41 = vld [vmem:[#allocation5] sm:$0xf]
    %v43 = vperm.slane %v41, 0
    %v44 = vperm.slane %v41, 1
    %v45 = vperm.slane %v41, 2
    %v46 = vperm.slane %v41, 3
    %v47 = vrot.slane %v44, 6
    %v48 = vrot.slane %v45, 4
    %v49 = vrot.slane %v46, 2
    %vm50 = vcmask 1041408
    %v51 = vsel %vm50, %v43, %v47
    %vm52 = vcmask 1045508
    %v53 = vsel %vm52, %v48, %v49
    %vm54 = vcmask 1043456
    %v55 = vsel %vm54, %v51, %v53
    %v57 = vadd.f32 %v40, %v55
    %58 = vst [vmem:[#allocation7] sm:$0xff] %v57
    // Predicated region
    $region18: #{tpu_custom_call.1} parent=1 // pred_check
      _
    $region19: #{tpu_custom_call.1} parent=1 // pred_check_branch
      %60 = sbr.rel (0) target = $region21
    $region20: #{tpu_custom_call.1} parent=1 // pred_region
      %62 = vsyncadd [#allocation4], 0
      %s64 = sshll.u32 [#allocation7], 4
      %s65 = int_to_ptr.vmem [resolvable:$true] %s64
      %s66 = sshll.u32 %s2, 4
      %s67 = int_to_ptr.hbm [resolvable:$true] %s66
      %69 = dma.vmem_to_hbm [thread:$0]  %s65, 128, %s67, [#allocation4]
    $region21: #{tpu_custom_call.1} parent=1 // pred_fallthru
      _
    // Predicated region
    $region22: #{tpu_custom_call.1} parent=1 // pred_check
      _
    $region23: #{tpu_custom_call.1} parent=1 // pred_check_branch
      %71 = sbr.rel (0) target = $region25
    $region24: #{tpu_custom_call.1} parent=1 // pred_region
      %73 = dma.done [#allocation4], 128
    $region25: #{tpu_custom_call.1} parent=1 // pred_fallthru
      _
    %74 = vsyncpa [#allocation3], 1
    %75 = vsyncpa [#allocation6], 1
    %76 = vsyncpa [#allocation4], 1

</llo_original>
